<compile_context>
chip_gen: v7x
topology: tpu7x:2x2x1
jax: 0.10.0
libtpu: 0.0.40
codegen_flags: <defaults>
</compile_context>

<pallas_src>
import functools

import jax
import jax.numpy as jnp
from jax.experimental import pallas as pl
from jax.experimental.pallas import tpu as pltpu


# Per-buffer payload target.  Input + output, double buffered, stays around
# 4 * _BLOCK_BUDGET_BYTES, comfortably inside every generation's scoped VMEM.
_BLOCK_BUDGET_BYTES = 1 << 20            # 1 MiB per buffer (could be swept per chip)
_VMEM_LIMIT_BYTES = 32 * 1024 * 1024     # explicit limit, safe on v5e/v6e/v7x
_MAX_UNROLL = 64                         # cap on unrolled per-slice 2-D transposes


def _divisor_at_most(n, cap):
    """Largest divisor of n that is <= cap (always >= 1)."""
    cap = max(1, min(int(n), int(cap)))
    for d in range(cap, 0, -1):
        if n % d == 0:
            return d
    return 1


def _aligned_tile(dim, cap, align):
    """Tile for a minor dim: the full dim if it fits under `cap`, else the
    largest multiple of `align` <= cap that divides `dim`, else the full dim."""
    dim = int(dim)
    if dim <= cap:
        return dim
    t = (cap // align) * align
    while t >= align:
        if dim % t == 0:
            return t
        t -= align
    return dim


def _copy_kernel(x_ref, o_ref):
    # The swap is realized purely through the output index_map (DMA
    # addressing); the kernel just moves a lane-dense (ba, bb, tc) tile.
    o_ref[...] = x_ref[...]


def _tile_transpose_kernel(x_ref, o_ref):
    # x_ref: (ta, tp, tq) -> o_ref: (ta, tq, tp).
    # ta is a small static block dim; unroll per-slice XLU transposes.
    # TODO(synk): for sub-32-bit dtypes a packed (bitcast-to-u32) transpose
    # would halve XLU work; not needed for the f32 demo.
    for s in range(x_ref.shape[0]):
        o_ref[s] = jnp.swapaxes(x_ref[s], 0, 1)


def _transpose_last(x, A, P, B, Q, itemsize, cost):
    """Swapped pair includes the minormost axis: tiled in-kernel transpose.

    Canonical input view (A, P, B, Q) -> canonical output (A, Q, B, P).
    """
    budget_elems = max(1, _BLOCK_BUDGET_BYTES // itemsize)
    # tp/tq are full dims or multiples of 128 so that both the (.., tp, tq)
    # input block and the (.., tq, tp) output block are (8,128)-friendly.
    tp = _aligned_tile(P, 512, 128)
    tq = _aligned_tile(Q, 512, 128)

    rest_extent = (P // tp) * (Q // tq) * B
    ta_cap = min(_MAX_UNROLL, max(1, budget_elems // (tp * tq)))
    if rest_extent == 1 and A >= 2:
        # Keep >= 2 parallel grid steps so both v7x TensorCores get work.
        ta_cap = min(ta_cap, max(1, A // 2))
    ta = _divisor_at_most(A, ta_cap)

    if B == 1:
        # Adjacent last-two swap: clean 3-D canonical view.
        operand = x.reshape(A, P, Q)
        out_sds = jax.ShapeDtypeStruct((A, Q, P), x.dtype)
        grid = (A // ta, P // tp, Q // tq)
        in_spec = pl.BlockSpec((ta, tp, tq), lambda a, i, j: (a, i, j))
        out_spec = pl.BlockSpec((ta, tq, tp), lambda a, i, j: (a, j, i))
    else:
        # Mixed case: a leading axis swapped with the minormost axis.  The
        # in-between axes (B) are iterated by the grid with block size 1 and
        # squeezed, so the kernel still sees clean (ta, tp, tq) tiles.
        operand = x.reshape(A, P, B, Q)
        out_sds = jax.ShapeDtypeStruct((A, Q, B, P), x.dtype)
        grid = (A // ta, P // tp, B, Q // tq)
        in_spec = pl.BlockSpec((ta, tp, None, tq),
                               lambda a, i, b, j: (a, i, b, j))
        out_spec = pl.BlockSpec((ta, tq, None, tp),
                                lambda a, i, b, j: (a, j, b, i))

    return pl.pallas_call(
        _tile_transpose_kernel,
        out_shape=out_sds,
        grid_spec=pltpu.PrefetchScalarGridSpec(
            num_scalar_prefetch=0,
            grid=grid,
            in_specs=[in_spec],
            out_specs=out_spec,
        ),
        compiler_params=pltpu.CompilerParams(
            dimension_semantics=("parallel",) * len(grid),
            vmem_limit_bytes=_VMEM_LIMIT_BYTES,
        ),
        cost_estimate=cost,
    )(operand)


def _transpose_copy(x, A, P, B, Q, C, itemsize, cost):
    """Swapped pair excludes the minormost axis: DMA-addressed copy.

    Canonical input view (A, P, B, Q, C) -> canonical output (A, Q, B, P, C).
    The lane-dense C stays the last block dim; A and B are folded into the
    block up to the byte budget.
    """
    budget_elems = max(1, _BLOCK_BUDGET_BYTES // itemsize)
    tc = _aligned_tile(C, budget_elems, 128)
    bb = _divisor_at_most(B, max(1, budget_elems // tc))
    ba = _divisor_at_most(A, max(1, budget_elems // (tc * bb)))
    # TODO(synk): adjacent swaps with a small trailing C (e.g. (B,S,H,D)
    # seq<->head) would benefit from additionally batching the swapped Q axis
    # into the block; that needs an in-kernel sublane relayout and is left out
    # here for robustness.

    xc = x.reshape(A, P, B, Q, C)
    grid = (A // ba, P, B // bb, Q, C // tc)
    in_spec = pl.BlockSpec((ba, None, bb, None, tc),
                           lambda a, p, b, q, c: (a, p, b, q, c))
    out_spec = pl.BlockSpec((ba, None, bb, None, tc),
                            lambda a, p, b, q, c: (a, q, b, p, c))

    return pl.pallas_call(
        _copy_kernel,
        out_shape=jax.ShapeDtypeStruct((A, Q, B, P, C), x.dtype),
        grid_spec=pltpu.PrefetchScalarGridSpec(
            num_scalar_prefetch=0,
            grid=grid,
            in_specs=[in_spec],
            out_specs=out_spec,
        ),
        compiler_params=pltpu.CompilerParams(
            dimension_semantics=("parallel",) * len(grid),
            vmem_limit_bytes=_VMEM_LIMIT_BYTES,
        ),
        cost_estimate=cost,
    )(xc)


@functools.partial(jax.jit, static_argnums=(1, 2))
def pallas_transpose(x, dim1, dim2):
    """Equivalent of torch.Tensor.transpose(dim1, dim2)."""
    r = x.ndim
    d1, d2 = sorted((dim1 % r, dim2 % r))
    if d1 == d2:
        return x

    out_shape = list(x.shape)
    out_shape[d1], out_shape[d2] = out_shape[d2], out_shape[d1]
    out_shape = tuple(out_shape)

    if x.size == 0 or x.shape[d1] == 1 or x.shape[d2] == 1:
        # Swapping a size-1 (or empty) axis is a pure metadata change; no
        # kernel needed.
        return jnp.swapaxes(x, d1, d2)

    def _prod(dims):
        p = 1
        for v in dims:
            p *= int(v)
        return p

    # Canonical view around the swapped axes: (A, P, B, Q, C).
    A = _prod(x.shape[:d1])
    P = int(x.shape[d1])
    B = _prod(x.shape[d1 + 1:d2])
    Q = int(x.shape[d2])
    C = _prod(x.shape[d2 + 1:])
    itemsize = int(jnp.dtype(x.dtype).itemsize)
    cost = pl.CostEstimate(flops=0, transcendentals=0,
                           bytes_accessed=2 * int(x.size) * itemsize)

    if C == 1:
        # The minormost axis is swapped -> tiled in-kernel transpose.
        yc = _transpose_last(x, A, P, B, Q, itemsize, cost)
    else:
        # The minormost axis is untouched -> lane-dense DMA-addressed copy.
        yc = _transpose_copy(x, A, P, B, Q, C, itemsize, cost)
    return yc.reshape(out_shape)


if __name__ == "__main__":
    key = jax.random.PRNGKey(0)
    # NCHW-style input, as in PyTorch conv conventions.
    x = jax.random.normal(key, (2, 4, 16, 128), dtype=jnp.float32)

    # Transpose(2, 3): swap H and W (minormost axis swapped -> tiled in-kernel
    # transpose, leading N*C batched into the block, grid split for 2 cores).
    y = jax.block_until_ready(pallas_transpose(x, 2, 3))
    y_ref = jnp.swapaxes(x, 2, 3)
    assert y.shape == y_ref.shape and y.dtype == y_ref.dtype
    assert bool(jnp.array_equal(y, y_ref))

    # Transpose(0, 1): swap N and C (minormost axis untouched -> lane-dense
    # DMA-addressed copy over the (A, P, B, Q, C) canonical view).
    z = jax.block_until_ready(pallas_transpose(x, 0, 1))
    z_ref = jnp.swapaxes(x, 0, 1)
    assert z.shape == z_ref.shape and z.dtype == z_ref.dtype
    assert bool(jnp.array_equal(z, z_ref))

    # Transpose(1, 2): leading <-> second-minor (previously NotImplementedError,
    # now handled by the copy path).
    w = jax.block_until_ready(pallas_transpose(x, 1, 2))
    w_ref = jnp.swapaxes(x, 1, 2)
    assert w.shape == w_ref.shape and w.dtype == w_ref.dtype
    assert bool(jnp.array_equal(w, w_ref))

    # Transpose(1, 3): leading <-> minormost (previously NotImplementedError,
    # now handled by the tiled-transpose path).
    v = jax.block_until_ready(pallas_transpose(x, 1, 3))
    v_ref = jnp.swapaxes(x, 1, 3)
    assert v.shape == v_ref.shape and v.dtype == v_ref.dtype
    assert bool(jnp.array_equal(v, v_ref))

    print("KERNEL_OK")
</pallas_src>

<mosaic_0001>
module attributes {stable_mosaic.version = 11 : i64} {
  func.func @_tile_transpose_kernel(%arg0: i32, %arg1: i32, %arg2: i32, %arg3: memref<4x16x128xf32, #tpu.memory_space<vmem>>, %arg4: memref<4x128x16xf32, #tpu.memory_space<vmem>>) attributes {dimension_semantics = [#tpu.dimension_semantics<parallel>, #tpu.dimension_semantics<parallel>, #tpu.dimension_semantics<parallel>], iteration_bounds = array<i64: 2, 1, 1>, scalar_prefetch = 0 : i64, scratch_operands = 0 : i64, tpu.core_type = #tpu.core_type<tc>, window_params = [{transform_indices = @transform_0, window_bounds = array<i64: 4, 16, 128>}, {transform_indices = @transform_1, window_bounds = array<i64: 4, 128, 16>}]} {
    %c0 = arith.constant 0 : index
    %c0_0 = arith.constant 0 : index
    %c0_1 = arith.constant 0 : index
    %0 = vector.load %arg3[%c0, %c0_0, %c0_1] : memref<4x16x128xf32, #tpu.memory_space<vmem>>, vector<1x16x128xf32>
    %1 = vector.shape_cast %0 : vector<1x16x128xf32> to vector<16x128xf32>
    %2 = tpu.transpose %1, [1, 0] : vector<16x128xf32> -> vector<128x16xf32>
    %c0_2 = arith.constant 0 : index
    %c0_3 = arith.constant 0 : index
    %c0_4 = arith.constant 0 : index
    %3 = vector.load %arg4[%c0_2, %c0_3, %c0_4] : memref<4x128x16xf32, #tpu.memory_space<vmem>>, vector<1x128x16xf32>
    %4 = vector.shape_cast %3 : vector<1x128x16xf32> to vector<128x16xf32>
    %5 = vector.shape_cast %2 : vector<128x16xf32> to vector<1x128x16xf32>
    tpu.vector_store %arg4[%c0_2, %c0_3, %c0_4], %5 {strides = array<i32>} : memref<4x128x16xf32, #tpu.memory_space<vmem>>, vector<1x128x16xf32>,
    %c1 = arith.constant 1 : index
    %c0_5 = arith.constant 0 : index
    %c0_6 = arith.constant 0 : index
    %6 = vector.load %arg3[%c1, %c0_5, %c0_6] : memref<4x16x128xf32, #tpu.memory_space<vmem>>, vector<1x16x128xf32>
    %7 = vector.shape_cast %6 : vector<1x16x128xf32> to vector<16x128xf32>
    %8 = tpu.transpose %7, [1, 0] : vector<16x128xf32> -> vector<128x16xf32>
    %c1_7 = arith.constant 1 : index
    %c0_8 = arith.constant 0 : index
    %c0_9 = arith.constant 0 : index
    %9 = vector.load %arg4[%c1_7, %c0_8, %c0_9] : memref<4x128x16xf32, #tpu.memory_space<vmem>>, vector<1x128x16xf32>
    %10 = vector.shape_cast %9 : vector<1x128x16xf32> to vector<128x16xf32>
    %11 = vector.shape_cast %8 : vector<128x16xf32> to vector<1x128x16xf32>
    tpu.vector_store %arg4[%c1_7, %c0_8, %c0_9], %11 {strides = array<i32>} : memref<4x128x16xf32, #tpu.memory_space<vmem>>, vector<1x128x16xf32>,
    %c2 = arith.constant 2 : index
    %c0_10 = arith.constant 0 : index
    %c0_11 = arith.constant 0 : index
    %12 = vector.load %arg3[%c2, %c0_10, %c0_11] : memref<4x16x128xf32, #tpu.memory_space<vmem>>, vector<1x16x128xf32>
    %13 = vector.shape_cast %12 : vector<1x16x128xf32> to vector<16x128xf32>
    %14 = tpu.transpose %13, [1, 0] : vector<16x128xf32> -> vector<128x16xf32>
    %c2_12 = arith.constant 2 : index
    %c0_13 = arith.constant 0 : index
    %c0_14 = arith.constant 0 : index
    %15 = vector.load %arg4[%c2_12, %c0_13, %c0_14] : memref<4x128x16xf32, #tpu.memory_space<vmem>>, vector<1x128x16xf32>
    %16 = vector.shape_cast %15 : vector<1x128x16xf32> to vector<128x16xf32>
    %17 = vector.shape_cast %14 : vector<128x16xf32> to vector<1x128x16xf32>
    tpu.vector_store %arg4[%c2_12, %c0_13, %c0_14], %17 {strides = array<i32>} : memref<4x128x16xf32, #tpu.memory_space<vmem>>, vector<1x128x16xf32>,
    %c3 = arith.constant 3 : index
    %c0_15 = arith.constant 0 : index
    %c0_16 = arith.constant 0 : index
    %18 = vector.load %arg3[%c3, %c0_15, %c0_16] : memref<4x16x128xf32, #tpu.memory_space<vmem>>, vector<1x16x128xf32>
    %19 = vector.shape_cast %18 : vector<1x16x128xf32> to vector<16x128xf32>
    %20 = tpu.transpose %19, [1, 0] : vector<16x128xf32> -> vector<128x16xf32>
    %c3_17 = arith.constant 3 : index
    %c0_18 = arith.constant 0 : index
    %c0_19 = arith.constant 0 : index
    %21 = vector.load %arg4[%c3_17, %c0_18, %c0_19] : memref<4x128x16xf32, #tpu.memory_space<vmem>>, vector<1x128x16xf32>
    %22 = vector.shape_cast %21 : vector<1x128x16xf32> to vector<128x16xf32>
    %23 = vector.shape_cast %20 : vector<128x16xf32> to vector<1x128x16xf32>
    tpu.vector_store %arg4[%c3_17, %c0_18, %c0_19], %23 {strides = array<i32>} : memref<4x128x16xf32, #tpu.memory_space<vmem>>, vector<1x128x16xf32>,
    return
  }
  func.func @transform_0(%arg0: i32, %arg1: i32, %arg2: i32) -> (i32, i32, i32) {
    %c0_i32 = arith.constant 0 : i32
    return %arg0, %arg1, %arg2 : i32, i32, i32
  }
  func.func @transform_1(%arg0: i32, %arg1: i32, %arg2: i32) -> (i32, i32, i32) {
    %c0_i32 = arith.constant 0 : i32
    return %arg0, %arg2, %arg1 : i32, i32, i32
  }
}

</mosaic_0001>

<llo_original>
// kernel: pallas_transpose.1
$region0: #{pallas_transpose.1}
  #allocation0 [shape = 'u32[]', space=smem, size = 0x4, offset = 0x4, fixed_abs, tag = 'smem constant byte address 0x4 - core index']
  #allocation1 [shape = 'u32[144,128]{1,0:T(1,128)}', space=vmem, size = 0x12000, scoped, tag = 'internal scratch']
  %s0 = inlined_call_operand.hbm [shape: f32[8,16,128], index: 0, kind: input, shape index: {}]
  %s1 = inlined_call_operand.vmem [shape: f32[8,128,16], index: 1, kind: output, shape index: {}]
  %s2 = sld [smem:[#allocation0]]
  $region41: #{pallas_transpose.1} parent=0
    _
  %s4 = ssub.s32 1, %s2
  %s5 = scalar_select 0, %s4, %s2
  $region1: #{pallas_transpose.1} parent=0
    #allocation2 [shape = 'u8[65536]{0}', space=vmem, size = 0x10000, scoped, tag = 'input window, operand 0']
    #allocation3 [shape = 's32[2]{0}', space=sflag, size = 0x8, scoped, tag = 'scoped memory for pallas_transpose.1']
    %6 = vsyncpa [#allocation3], 0
    %s7 = scalar_lea.sflag [#allocation3], 1
    %8 = vsyncpa %s7, 0
    loop: start=0, step=1, limit=4
    $region2: #{pallas_transpose.1} parent=1 // loop_pre_header
      _
    $region3: #{pallas_transpose.1} parent=1 // loop_header
      %s10 = sphi 0, %s14
      %p11 = scmp.ge.s32.totalorder %s10, 4
      %s17 = sphi 0, %s36
      %s18 = sphi 0, %s32
      %s19 = sphi 0, %s28
      %s20 = sphi 0, %s17
      %s21 = sphi 0, %s18
      %s22 = sphi 0, %s19
      %s23 = sphi 0, %s20
      %s24 = sphi 0, %s21
      %s25 = sphi 0, %s22
      %s43 = sphi 0, %s45
      %s46 = sphi 0, %s43
      %s47 = sphi 0, %s46
      %s63 = sphi 0, %s47
      %s73 = sphi 0, %s75
      %s76 = sphi 0, %s73
      %s77 = sphi 0, %s76
      %s93 = sphi 0, %s77
    $region4: #{pallas_transpose.1} parent=1 // loop_header_branch
      %13 = sbr.rel (%p11) target = $region8
    $region5: #{pallas_transpose.1} parent=1 // loop_body
      %s15 = ssub.s32 %s10, 1
      %s16 = ssub.s32 %s10, 2
      %s26 = sadd.s32 1, %s19
      %p27 = scmp.ge.s32.totalorder %s26, 1
      %s28 = scalar_select %p27, 0, %s26
      %s29 = sadd.s32 1, %s18
      %s30 = scalar_select %p27, %s29, %s18
      %p31 = scmp.ge.s32.totalorder %s30, 1
      %s32 = scalar_select %p31, 0, %s30
      %s33 = sadd.s32 1, %s17
      %s34 = scalar_select %p31, %s33, %s17
      %p35 = scmp.ge.s32.totalorder %s34, 2
      %s36 = scalar_select %p35, 0, %s34
      %s37 = ssub.s32 %s17, %s36
      %s38 = ssub.s32 %s18, %s32
      %s39 = sor.u32 %s37, %s38
      %s40 = ssub.s32 %s19, %s28
      %s41 = sor.u32 %s39, %s40
      %p42 = scmp.eq.s32.totalorder %s41, 0
      %s44 = sadd.s32 %s43, 1
      %s45 = scalar_select %p42, %s43, %s44
      %p48 = pneg %p42
      %p49 = scmp.eq.s32.totalorder %s10, 1
      %p50 = por %p48, %p49
      %p51 = scmp.ne.s32.totalorder %s43, %s46
      %p52 = scmp.eq.s32.totalorder %s10, 0
      %p53 = por %p51, %p52
      %p54 = scmp.ne.s32.totalorder %s43, %s46
      %p55 = scmp.eq.s32.totalorder %s15, 1
      %p56 = por %p54, %p55
      %p57 = scmp.ne.s32.totalorder %s46, %s47
      %p58 = scmp.eq.s32.totalorder %s15, 0
      %p59 = por %p57, %p58
      %p60 = scmp.ne.s32.totalorder %s46, %s47
      %p61 = scmp.eq.s32.totalorder %s16, 1
      %p62 = por %p60, %p61
      %p64 = scmp.ne.s32.totalorder %s47, %s63
      %p65 = scmp.eq.s32.totalorder %s16, 0
      %p66 = por %p64, %p65
      %s67 = ssub.s32 %s17, %s36
      %s68 = ssub.s32 %s19, %s28
      %s69 = sor.u32 %s67, %s68
      %s70 = ssub.s32 %s18, %s32
      %s71 = sor.u32 %s69, %s70
      %p72 = scmp.eq.s32.totalorder %s71, 0
      %s74 = sadd.s32 %s73, 1
      %s75 = scalar_select %p72, %s73, %s74
      %p78 = pneg %p72
      %p79 = scmp.eq.s32.totalorder %s10, 1
      %p80 = por %p78, %p79
      %p81 = scmp.ne.s32.totalorder %s73, %s76
      %p82 = scmp.eq.s32.totalorder %s10, 0
      %p83 = por %p81, %p82
      %p84 = scmp.ne.s32.totalorder %s73, %s76
      %p85 = scmp.eq.s32.totalorder %s15, 1
      %p86 = por %p84, %p85
      %p87 = scmp.ne.s32.totalorder %s76, %s77
      %p88 = scmp.eq.s32.totalorder %s15, 0
      %p89 = por %p87, %p88
      %p90 = scmp.ne.s32.totalorder %s76, %s77
      %p91 = scmp.eq.s32.totalorder %s16, 1
      %p92 = por %p90, %p91
      %p94 = scmp.ne.s32.totalorder %s77, %s93
      %p95 = scmp.eq.s32.totalorder %s16, 0
      %p96 = por %p94, %p95
      %p97 = scmp.le.s32.totalorder 1, %s10
      %p98 = scmp.lt.s32.totalorder %s10, 3
      %p99 = pnand %p97, %p98
      %p100 = pneg %p99
      // Predicated region
      $region9: #{pallas_transpose.1} parent=5 // pred_check
        _
      $region10: #{pallas_transpose.1} parent=5 // pred_check_branch
        %102 = sbr.rel (%p99) target = $region12
      $region11: #{pallas_transpose.1} parent=5 // pred_region
        %s103 = ssub.s32 %s10, 1
      $region12: #{pallas_transpose.1} parent=5 // pred_fallthru
        _
      %p104 = scmp.lt.s32.totalorder %s10, 2
      // Predicated region
      $region13: #{pallas_transpose.1} parent=5 // pred_check
        %p105 = pneg %p104
      $region14: #{pallas_transpose.1} parent=5 // pred_check_branch
        %107 = sbr.rel (%p105) target = $region16
      $region15: #{pallas_transpose.1} parent=5 // pred_region
        // Predicated region
        $region17: #{pallas_transpose.1} parent=15 // pred_check
          %p108 = pneg %p53
        $region18: #{pallas_transpose.1} parent=15 // pred_check_branch
          %110 = sbr.rel (%p108) target = $region20
        $region19: #{pallas_transpose.1} parent=15 // pred_region
          %s111 = sand.u32 %s43, 1
          %s112 = scalar_lea.sflag [#allocation3], %s111
          %s113 = sand.u32 %s43, 1
          %s114 = smul.addr %s113, 64
          %s115 = scalar_lea.vmem [#allocation2], %s114
          %s116 = smul.u32 4, %s17
          %s117 = smul.u32 2, %s18
          %s119 = ssub.s32 1024, 1024
          %120 = vsyncadd %s112, %s119
          %s121 = sadd.s32 %s19, %s117
          %s122 = smul.addr %s116, 2
          %s123 = sadd.s32 %s121, %s122
          %s124 = smul.addr %s123, 128
          %s125 = scalar_lea.hbm %s0, %s124
          %s126 = sshll.u32 %s115, 4
          %s127 = int_to_ptr.vmem [resolvable:$true] %s126
          %132 = dma.hbm_to_vmem [thread:$0]  %s125, 1024, %s127, %s112, 128, 128, 8
        $region20: #{pallas_transpose.1} parent=15 // pred_fallthru
          _
      $region16: #{pallas_transpose.1} parent=5 // pred_fallthru
        _
      %p133 = scmp.le.s32.totalorder 1, %s10
      %p134 = scmp.lt.s32.totalorder %s10, 3
      %p135 = pnand %p133, %p134
      %p136 = pneg %p135
      // Predicated region
      $region21: #{pallas_transpose.1} parent=5 // pred_check
        _
      $region22: #{pallas_transpose.1} parent=5 // pred_check_branch
        %138 = sbr.rel (%p135) target = $region24
      $region23: #{pallas_transpose.1} parent=5 // pred_region
        %s139 = ssub.s32 %s10, 1
        %s140 = sand.u32 %s46, 1
        %s141 = scalar_lea.sflag [#allocation3], %s140
        %s142 = sand.u32 %s46, 1
        %s143 = smul.addr %s142, 64
        %s144 = scalar_lea.vmem [#allocation2], %s143
        // Predicated region
        $region25: #{pallas_transpose.1} parent=23 // pred_check
          %p145 = pneg %p59
        $region26: #{pallas_transpose.1} parent=23 // pred_check_branch
          %147 = sbr.rel (%p145) target = $region28
        $region27: #{pallas_transpose.1} parent=23 // pred_region
          %148 = dma.done %s141, 1024
        $region28: #{pallas_transpose.1} parent=23 // pred_fallthru
          _
        %s149 = sand.u32 %s46, 1
        %s150 = scalar_lea.sflag [#allocation3], %s149
        %s151 = sand.u32 %s46, 1
        %s152 = smul.addr %s151, 64
        %s153 = scalar_lea.vmem [#allocation2], %s152
        %p154 = pneg %p59
        %p155 = pneg %p56
        %p156 = pneg %p89
        %p157 = pneg %p86
        %s158 = smul.u32 4, %s20
        %s159 = smul.u32 16, %s22
        %p160 = scmp.lt.s32.totalorder %s158, 7
        %s161 = scalar_select %p160, %s158, 7
        %p162 = scmp.lt.s32.totalorder %s159, 15
        %s163 = scalar_select %p162, %s159, 15
        %p164 = scmp.lt.s32.totalorder %s21, 0
        %s165 = scalar_select %p164, %s21, 0
        %s166 = sadd.s32 %s165, %s163
        %s167 = smul.addr %s161, 16
        %s168 = sadd.s32 %s166, %s167
        %s169 = smul.addr %s168, 8
        %s170 = scalar_lea.vmem %s1, %s169
        %s171 = smul.u32 4, %s20
        %s172 = smul.u32 2, %s21
        %s173 = smul.u32 4, %s20
        %s174 = smul.u32 16, %s22
        %p175 = scmp.lt.s32.totalorder %s173, 7
        %s176 = scalar_select %p175, %s173, 7
        %p177 = scmp.lt.s32.totalorder %s174, 15
        %s178 = scalar_select %p177, %s174, 15
        %p179 = scmp.lt.s32.totalorder %s21, 0
        %s180 = scalar_select %p179, %s21, 0
        %s181 = sadd.s32 %s180, %s178
        %s182 = smul.addr %s176, 16
        %s183 = sadd.s32 %s181, %s182
        %s184 = smul.addr %s183, 8
        %s185 = scalar_lea.vmem %s1, %s184
        %s186 = smul.u32 4, %s20
        %s187 = smul.u32 16, %s22
        %v188 = vld [vmem:[%s144] sm:$0xff]
        %v189 = vld [vmem:[%s144 + $0x8] sm:$0xff]
        %190 = vxpose.xlu0.b32.start [1/16] %v188, 128
        %191 = vxpose.xlu0.b32.cont [2/16] %v189, 128
        %192 = vxpose.xlu0.b32.cont [3/16] 0.0, 128
        %193 = vxpose.xlu0.b32.cont [4/16] 0.0, 128
        %194 = vxpose.xlu0.b32.cont [5/16] 0.0, 128
        %195 = vxpose.xlu0.b32.cont [6/16] 0.0, 128
        %196 = vxpose.xlu0.b32.cont [7/16] 0.0, 128
        %197 = vxpose.xlu0.b32.cont [8/16] 0.0, 128
        %198 = vxpose.xlu0.b32.cont [9/16] 0.0, 128
        %199 = vxpose.xlu0.b32.cont [10/16] 0.0, 128
        %200 = vxpose.xlu0.b32.cont [11/16] 0.0, 128
        %201 = vxpose.xlu0.b32.cont [12/16] 0.0, 128
        %202 = vxpose.xlu0.b32.cont [13/16] 0.0, 128
        %203 = vxpose.xlu0.b32.cont [14/16] 0.0, 128
        %204 = vxpose.xlu0.b32.cont [15/16] 0.0, 128
        %205 = vxpose.xlu0.b32.end [16/16] 0.0, 128
        %v206 = vpop.trf.xlu0
        %v207 = vpop.trf.xlu0
        %v208 = vpop.trf.xlu0
        %v209 = vpop.trf.xlu0
        %v210 = vpop.trf.xlu0
        %v211 = vpop.trf.xlu0
        %v212 = vpop.trf.xlu0
        %v213 = vpop.trf.xlu0
        %v214 = vpop.trf.xlu0
        %v215 = vpop.trf.xlu0
        %v216 = vpop.trf.xlu0
        %v217 = vpop.trf.xlu0
        %v218 = vpop.trf.xlu0
        %v219 = vpop.trf.xlu0
        %v220 = vpop.trf.xlu0
        %v221 = vpop.trf.xlu0
        %vm222 = vcmask 130048
        %223 = vst.msk [vmem:[%s185] sm:$0xff] %vm222, %v206
        %224 = vst.msk [vmem:[%s185 + $0x8] sm:$0xff] %vm222, %v207
        %225 = vst.msk [vmem:[%s185 + $0x10] sm:$0xff] %vm222, %v208
        %226 = vst.msk [vmem:[%s185 + $0x18] sm:$0xff] %vm222, %v209
        %227 = vst.msk [vmem:[%s185 + $0x20] sm:$0xff] %vm222, %v210
        %228 = vst.msk [vmem:[%s185 + $0x28] sm:$0xff] %vm222, %v211
        %229 = vst.msk [vmem:[%s185 + $0x30] sm:$0xff] %vm222, %v212
        %230 = vst.msk [vmem:[%s185 + $0x38] sm:$0xff] %vm222, %v213
        %231 = vst.msk [vmem:[%s185 + $0x40] sm:$0xff] %vm222, %v214
        %232 = vst.msk [vmem:[%s185 + $0x48] sm:$0xff] %vm222, %v215
        %233 = vst.msk [vmem:[%s185 + $0x50] sm:$0xff] %vm222, %v216
        %234 = vst.msk [vmem:[%s185 + $0x58] sm:$0xff] %vm222, %v217
        %235 = vst.msk [vmem:[%s185 + $0x60] sm:$0xff] %vm222, %v218
        %236 = vst.msk [vmem:[%s185 + $0x68] sm:$0xff] %vm222, %v219
        %237 = vst.msk [vmem:[%s185 + $0x70] sm:$0xff] %vm222, %v220
        %238 = vst.msk [vmem:[%s185 + $0x78] sm:$0xff] %vm222, %v221
        %s239 = scalar_lea.vmem %s144, 16 [#allocation2]
        %v240 = vld [vmem:[%s239] sm:$0xff]
        %v241 = vld [vmem:[%s239 + $0x8] sm:$0xff]
        %242 = vxpose.xlu0.b32.start [1/16] %v240, 128
        %243 = vxpose.xlu0.b32.cont [2/16] %v241, 128
        %244 = vxpose.xlu0.b32.cont [3/16] 0.0, 128
        %245 = vxpose.xlu0.b32.cont [4/16] 0.0, 128
        %246 = vxpose.xlu0.b32.cont [5/16] 0.0, 128
        %247 = vxpose.xlu0.b32.cont [6/16] 0.0, 128
        %248 = vxpose.xlu0.b32.cont [7/16] 0.0, 128
        %249 = vxpose.xlu0.b32.cont [8/16] 0.0, 128
        %250 = vxpose.xlu0.b32.cont [9/16] 0.0, 128
        %251 = vxpose.xlu0.b32.cont [10/16] 0.0, 128
        %252 = vxpose.xlu0.b32.cont [11/16] 0.0, 128
        %253 = vxpose.xlu0.b32.cont [12/16] 0.0, 128
        %254 = vxpose.xlu0.b32.cont [13/16] 0.0, 128
        %255 = vxpose.xlu0.b32.cont [14/16] 0.0, 128
        %256 = vxpose.xlu0.b32.cont [15/16] 0.0, 128
        %257 = vxpose.xlu0.b32.end [16/16] 0.0, 128
        %v258 = vpop.trf.xlu0
        %v259 = vpop.trf.xlu0
        %v260 = vpop.trf.xlu0
        %v261 = vpop.trf.xlu0
        %v262 = vpop.trf.xlu0
        %v263 = vpop.trf.xlu0
        %v264 = vpop.trf.xlu0
        %v265 = vpop.trf.xlu0
        %v266 = vpop.trf.xlu0
        %v267 = vpop.trf.xlu0
        %v268 = vpop.trf.xlu0
        %v269 = vpop.trf.xlu0
        %v270 = vpop.trf.xlu0
        %v271 = vpop.trf.xlu0
        %v272 = vpop.trf.xlu0
        %v273 = vpop.trf.xlu0
        %s274 = scalar_lea.vmem %s185, 128
        %275 = vst.msk [vmem:[%s274] sm:$0xff] %vm222, %v258
        %276 = vst.msk [vmem:[%s274 + $0x8] sm:$0xff] %vm222, %v259
        %277 = vst.msk [vmem:[%s274 + $0x10] sm:$0xff] %vm222, %v260
        %278 = vst.msk [vmem:[%s274 + $0x18] sm:$0xff] %vm222, %v261
        %279 = vst.msk [vmem:[%s274 + $0x20] sm:$0xff] %vm222, %v262
        %280 = vst.msk [vmem:[%s274 + $0x28] sm:$0xff] %vm222, %v263
        %281 = vst.msk [vmem:[%s274 + $0x30] sm:$0xff] %vm222, %v264
        %282 = vst.msk [vmem:[%s274 + $0x38] sm:$0xff] %vm222, %v265
        %283 = vst.msk [vmem:[%s274 + $0x40] sm:$0xff] %vm222, %v266
        %284 = vst.msk [vmem:[%s274 + $0x48] sm:$0xff] %vm222, %v267
        %285 = vst.msk [vmem:[%s274 + $0x50] sm:$0xff] %vm222, %v268
        %286 = vst.msk [vmem:[%s274 + $0x58] sm:$0xff] %vm222, %v269
        %287 = vst.msk [vmem:[%s274 + $0x60] sm:$0xff] %vm222, %v270
        %288 = vst.msk [vmem:[%s274 + $0x68] sm:$0xff] %vm222, %v271
        %289 = vst.msk [vmem:[%s274 + $0x70] sm:$0xff] %vm222, %v272
        %290 = vst.msk [vmem:[%s274 + $0x78] sm:$0xff] %vm222, %v273
        %s291 = scalar_lea.vmem %s144, 32 [#allocation2]
        %v292 = vld [vmem:[%s291] sm:$0xff]
        %v293 = vld [vmem:[%s291 + $0x8] sm:$0xff]
        %294 = vxpose.xlu0.b32.start [1/16] %v292, 128
        %295 = vxpose.xlu0.b32.cont [2/16] %v293, 128
        %296 = vxpose.xlu0.b32.cont [3/16] 0.0, 128
        %297 = vxpose.xlu0.b32.cont [4/16] 0.0, 128
        %298 = vxpose.xlu0.b32.cont [5/16] 0.0, 128
        %299 = vxpose.xlu0.b32.cont [6/16] 0.0, 128
        %300 = vxpose.xlu0.b32.cont [7/16] 0.0, 128
        %301 = vxpose.xlu0.b32.cont [8/16] 0.0, 128
        %302 = vxpose.xlu0.b32.cont [9/16] 0.0, 128
        %303 = vxpose.xlu0.b32.cont [10/16] 0.0, 128
        %304 = vxpose.xlu0.b32.cont [11/16] 0.0, 128
        %305 = vxpose.xlu0.b32.cont [12/16] 0.0, 128
        %306 = vxpose.xlu0.b32.cont [13/16] 0.0, 128
        %307 = vxpose.xlu0.b32.cont [14/16] 0.0, 128
        %308 = vxpose.xlu0.b32.cont [15/16] 0.0, 128
        %309 = vxpose.xlu0.b32.end [16/16] 0.0, 128
        %v310 = vpop.trf.xlu0
        %v311 = vpop.trf.xlu0
        %v312 = vpop.trf.xlu0
        %v313 = vpop.trf.xlu0
        %v314 = vpop.trf.xlu0
        %v315 = vpop.trf.xlu0
        %v316 = vpop.trf.xlu0
        %v317 = vpop.trf.xlu0
        %v318 = vpop.trf.xlu0
        %v319 = vpop.trf.xlu0
        %v320 = vpop.trf.xlu0
        %v321 = vpop.trf.xlu0
        %v322 = vpop.trf.xlu0
        %v323 = vpop.trf.xlu0
        %v324 = vpop.trf.xlu0
        %v325 = vpop.trf.xlu0
        %s326 = scalar_lea.vmem %s185, 256
        %327 = vst.msk [vmem:[%s326] sm:$0xff] %vm222, %v310
        %328 = vst.msk [vmem:[%s326 + $0x8] sm:$0xff] %vm222, %v311
        %329 = vst.msk [vmem:[%s326 + $0x10] sm:$0xff] %vm222, %v312
        %330 = vst.msk [vmem:[%s326 + $0x18] sm:$0xff] %vm222, %v313
        %331 = vst.msk [vmem:[%s326 + $0x20] sm:$0xff] %vm222, %v314
        %332 = vst.msk [vmem:[%s326 + $0x28] sm:$0xff] %vm222, %v315
        %333 = vst.msk [vmem:[%s326 + $0x30] sm:$0xff] %vm222, %v316
        %334 = vst.msk [vmem:[%s326 + $0x38] sm:$0xff] %vm222, %v317
        %335 = vst.msk [vmem:[%s326 + $0x40] sm:$0xff] %vm222, %v318
        %336 = vst.msk [vmem:[%s326 + $0x48] sm:$0xff] %vm222, %v319
        %337 = vst.msk [vmem:[%s326 + $0x50] sm:$0xff] %vm222, %v320
        %338 = vst.msk [vmem:[%s326 + $0x58] sm:$0xff] %vm222, %v321
        %339 = vst.msk [vmem:[%s326 + $0x60] sm:$0xff] %vm222, %v322
        %340 = vst.msk [vmem:[%s326 + $0x68] sm:$0xff] %vm222, %v323
        %341 = vst.msk [vmem:[%s326 + $0x70] sm:$0xff] %vm222, %v324
        %342 = vst.msk [vmem:[%s326 + $0x78] sm:$0xff] %vm222, %v325
        %s343 = scalar_lea.vmem %s144, 48 [#allocation2]
        %v344 = vld [vmem:[%s343] sm:$0xff]
        %v345 = vld [vmem:[%s343 + $0x8] sm:$0xff]
        %346 = vxpose.xlu0.b32.start [1/16] %v344, 128
        %347 = vxpose.xlu0.b32.cont [2/16] %v345, 128
        %348 = vxpose.xlu0.b32.cont [3/16] 0.0, 128
        %349 = vxpose.xlu0.b32.cont [4/16] 0.0, 128
        %350 = vxpose.xlu0.b32.cont [5/16] 0.0, 128
        %351 = vxpose.xlu0.b32.cont [6/16] 0.0, 128
        %352 = vxpose.xlu0.b32.cont [7/16] 0.0, 128
        %353 = vxpose.xlu0.b32.cont [8/16] 0.0, 128
        %354 = vxpose.xlu0.b32.cont [9/16] 0.0, 128
        %355 = vxpose.xlu0.b32.cont [10/16] 0.0, 128
        %356 = vxpose.xlu0.b32.cont [11/16] 0.0, 128
        %357 = vxpose.xlu0.b32.cont [12/16] 0.0, 128
        %358 = vxpose.xlu0.b32.cont [13/16] 0.0, 128
        %359 = vxpose.xlu0.b32.cont [14/16] 0.0, 128
        %360 = vxpose.xlu0.b32.cont [15/16] 0.0, 128
        %361 = vxpose.xlu0.b32.end [16/16] 0.0, 128
        %v362 = vpop.trf.xlu0
        %v363 = vpop.trf.xlu0
        %v364 = vpop.trf.xlu0
        %v365 = vpop.trf.xlu0
        %v366 = vpop.trf.xlu0
        %v367 = vpop.trf.xlu0
        %v368 = vpop.trf.xlu0
        %v369 = vpop.trf.xlu0
        %v370 = vpop.trf.xlu0
        %v371 = vpop.trf.xlu0
        %v372 = vpop.trf.xlu0
        %v373 = vpop.trf.xlu0
        %v374 = vpop.trf.xlu0
        %v375 = vpop.trf.xlu0
        %v376 = vpop.trf.xlu0
        %v377 = vpop.trf.xlu0
        %s378 = scalar_lea.vmem %s185, 384
        %379 = vst.msk [vmem:[%s378] sm:$0xff] %vm222, %v362
        %380 = vst.msk [vmem:[%s378 + $0x8] sm:$0xff] %vm222, %v363
        %381 = vst.msk [vmem:[%s378 + $0x10] sm:$0xff] %vm222, %v364
        %382 = vst.msk [vmem:[%s378 + $0x18] sm:$0xff] %vm222, %v365
        %383 = vst.msk [vmem:[%s378 + $0x20] sm:$0xff] %vm222, %v366
        %384 = vst.msk [vmem:[%s378 + $0x28] sm:$0xff] %vm222, %v367
        %385 = vst.msk [vmem:[%s378 + $0x30] sm:$0xff] %vm222, %v368
        %386 = vst.msk [vmem:[%s378 + $0x38] sm:$0xff] %vm222, %v369
        %387 = vst.msk [vmem:[%s378 + $0x40] sm:$0xff] %vm222, %v370
        %388 = vst.msk [vmem:[%s378 + $0x48] sm:$0xff] %vm222, %v371
        %389 = vst.msk [vmem:[%s378 + $0x50] sm:$0xff] %vm222, %v372
        %390 = vst.msk [vmem:[%s378 + $0x58] sm:$0xff] %vm222, %v373
        %391 = vst.msk [vmem:[%s378 + $0x60] sm:$0xff] %vm222, %v374
        %392 = vst.msk [vmem:[%s378 + $0x68] sm:$0xff] %vm222, %v375
        %393 = vst.msk [vmem:[%s378 + $0x70] sm:$0xff] %vm222, %v376
        %394 = vst.msk [vmem:[%s378 + $0x78] sm:$0xff] %vm222, %v377
        %s395 = smul.u32 4, %s20
        %s396 = smul.u32 16, %s22
        %p397 = scmp.lt.s32.totalorder %s395, 7
        %s398 = scalar_select %p397, %s395, 7
        %p399 = scmp.lt.s32.totalorder %s396, 15
        %s400 = scalar_select %p399, %s396, 15
        %p401 = scmp.lt.s32.totalorder %s21, 0
        %s402 = scalar_select %p401, %s21, 0
        %s403 = sadd.s32 %s402, %s400
        %s404 = smul.addr %s398, 16
        %s405 = sadd.s32 %s403, %s404
        %s406 = smul.addr %s405, 8
        %s407 = scalar_lea.vmem %s1, %s406
        // Predicated region
        $region29: #{pallas_transpose.1} parent=23 // pred_check
          %p408 = pneg %p86
        $region30: #{pallas_transpose.1} parent=23 // pred_check_branch
          %410 = sbr.rel (%p408) target = $region32
        $region31: #{pallas_transpose.1} parent=23 // pred_region
          %s411 = smul.u32 4, %s20
          %s412 = smul.u32 16, %s22
        $region32: #{pallas_transpose.1} parent=23 // pred_fallthru
          _
      $region24: #{pallas_transpose.1} parent=5 // pred_fallthru
        _
      %p413 = scmp.le.s32.totalorder 2, %s10
      // Predicated region
      $region33: #{pallas_transpose.1} parent=5 // pred_check
        %p414 = pneg %p413
      $region34: #{pallas_transpose.1} parent=5 // pred_check_branch
        %416 = sbr.rel (%p414) target = $region36
      $region35: #{pallas_transpose.1} parent=5 // pred_region
        %s417 = ssub.s32 %s10, 2
        // Predicated region
        $region37: #{pallas_transpose.1} parent=35 // pred_check
          %p418 = pneg %p92
        $region38: #{pallas_transpose.1} parent=35 // pred_check_branch
          %420 = sbr.rel (%p418) target = $region40
        $region39: #{pallas_transpose.1} parent=35 // pred_region
          %s421 = smul.u32 4, %s23
          %s422 = smul.u32 16, %s25
          %p423 = scmp.lt.s32.totalorder %s421, 7
          %s424 = scalar_select %p423, %s421, 7
          %p425 = scmp.lt.s32.totalorder %s422, 15
          %s426 = scalar_select %p425, %s422, 15
          %p427 = scmp.lt.s32.totalorder %s24, 0
          %s428 = scalar_select %p427, %s24, 0
          %s429 = sadd.s32 %s428, %s426
          %s430 = smul.addr %s424, 16
          %s431 = sadd.s32 %s429, %s430
          %s432 = smul.addr %s431, 8
          %s433 = scalar_lea.vmem %s1, %s432
        $region40: #{pallas_transpose.1} parent=35 // pred_fallthru
          _
      $region36: #{pallas_transpose.1} parent=5 // pred_fallthru
        _
    $region6: #{pallas_transpose.1} parent=1 // loop_footer
      %s14 = sadd.s32 1, %s10
    $region7: #{pallas_transpose.1} parent=1 // loop_footer_branch
      %9 = sbr.rel target = $region3
    $region8: #{pallas_transpose.1} parent=1 // loop_exit
      _
    %434 = vsyncpa [#allocation3], 1
    %s435 = scalar_lea.sflag [#allocation3], 1
    %436 = vsyncpa %s435, 1

</llo_original>
